<compile_context>
chip_gen: v7x
topology: tpu7x:2x2x1
jax: 0.10.0
libtpu: 0.0.40
codegen_flags: <defaults>
</compile_context>

<pallas_src>
import functools

import jax
import jax.numpy as jnp
from jax.experimental import pallas as pl
from jax.experimental.pallas import tpu as pltpu


def _ls_ce_kernel(x_ref, t_ref, out_ref, *, smoothing, n_rows):
    i = pl.program_id(0)

    x_raw = x_ref[...]                                    # (tn, C) input dtype
    tn, c = x_raw.shape
    xf = x_raw.astype(jnp.float32)                        # single upcast, reused

    # numerically stable logsumexp along the class (lane) axis
    m = jnp.max(xf, axis=-1, keepdims=True)               # (tn, 1)
    sum_exp = jnp.sum(jnp.exp(xf - m), axis=-1, keepdims=True)
    lse = jnp.log(sum_exp) + m

    # x[i, target[i]] via one-hot masked lane reduction; compare/select in the
    # input dtype (exact: only one non-zero term), (1, C) lane iota broadcast.
    tgt = t_ref[...]                                       # (tn, 1) int32
    cls = jax.lax.broadcasted_iota(jnp.int32, (1, c), 1)   # (1, C)
    x_tgt = jnp.sum(
        jnp.where(cls == tgt, x_raw, jnp.zeros((), x_raw.dtype)),
        axis=-1, keepdims=True,
    ).astype(jnp.float32)

    sum_x = jnp.sum(xf, axis=-1, keepdims=True)            # (tn, 1)

    conf = jnp.float32(1.0 - smoothing)
    loss = lse - conf * x_tgt - jnp.float32(smoothing / c) * sum_x   # (tn, 1)

    # Mask rows beyond N (ragged last tile reads uninitialized HBM padding).
    row = jax.lax.broadcasted_iota(jnp.int32, (tn, 1), 0) + i * tn
    loss = jnp.where(row < n_rows, loss, jnp.float32(0.0))

    # One partial sum per tile -> tiny lane-free writeback, summed in wrapper.
    out_ref[...] = jnp.sum(loss).reshape(1, 1, 1)


def _round_up(v, m):
    return (v + m - 1) // m * m


def _device_kind():
    try:
        return jax.devices()[0].device_kind.lower()
    except Exception:  # pragma: no cover - be conservative if query fails
        return ""


def _pick_tile(n, c, itemsize):
    """Row tile (multiple of 16) sized against the true VMEM working set."""
    kind = _device_kind()
    if "v7" in kind or "7x" in kind:
        # v7x: 64 MiB VMEM per TensorCore -> smaller budgets.
        ws_budget, block_cap, vmem_limit = 40 << 20, 4 << 20, 56 << 20
    else:
        # v5e / v6e: 128 MiB VMEM.
        ws_budget, block_cap, vmem_limit = 72 << 20, 8 << 20, 96 << 20

    # Per-element working set: 2x double-buffered input block + f32 upcast +
    # exp temp + one-hot select (input dtype) + compare mask.
    bytes_per_elem = 3 * itemsize + 12
    rows = min(ws_budget // max(c * bytes_per_elem, 1),
               block_cap // max(c * itemsize, 1),
               8192)
    rows = max((rows // 16) * 16, 16)
    rows = min(rows, _round_up(n, 16))
    if n >= 64:
        # Keep grid length >= 2 so both TensorCores get work on v7x.
        rows = min(rows, _round_up(-(-n // 2), 16))
    return rows, vmem_limit


def label_smoothing_cross_entropy(x, target, smoothing=0.1):
    """x: (N, C) float logits (f32 or bf16); target: (N,) int labels -> scalar f32."""
    n, c = x.shape
    itemsize = jnp.dtype(x.dtype).itemsize
    tile_n, vmem_limit = _pick_tile(n, c, itemsize)
    num_tiles = pl.cdiv(n, tile_n)

    target2d = target.astype(jnp.int32).reshape(n, 1)
    kernel = functools.partial(_ls_ce_kernel, smoothing=float(smoothing), n_rows=n)

    partial_sums = pl.pallas_call(
        kernel,
        out_shape=jax.ShapeDtypeStruct((num_tiles, 1, 1), jnp.float32),
        grid_spec=pltpu.PrefetchScalarGridSpec(
            num_scalar_prefetch=0,
            grid=(num_tiles,),
            in_specs=[
                pl.BlockSpec((tile_n, c), lambda i: (i, 0)),
                pl.BlockSpec((tile_n, 1), lambda i: (i, 0)),
            ],
            out_specs=pl.BlockSpec((1, 1, 1), lambda i: (i, 0, 0)),
        ),
        compiler_params=pltpu.CompilerParams(
            dimension_semantics=("parallel",),   # independent tiles -> megacore on v7x
            vmem_limit_bytes=vmem_limit,
        ),
    )(x, target2d)

    return jnp.sum(partial_sums) / jnp.float32(n)


def _reference(x, target, smoothing=0.1):
    logprobs = jax.nn.log_softmax(x.astype(jnp.float32), axis=-1)
    nll = -jnp.take_along_axis(logprobs, target[:, None].astype(jnp.int32), axis=-1)[:, 0]
    smooth = -jnp.mean(logprobs, axis=-1)
    loss = (1.0 - smoothing) * nll + smoothing * smooth
    return jnp.mean(loss)


if __name__ == "__main__":
    key = jax.random.PRNGKey(0)
    kx, kt = jax.random.split(key)

    # Case 1: f32 logits, N a multiple of the tile.
    N, C = 16, 32
    x = jax.random.normal(kx, (N, C), dtype=jnp.float32)
    target = jax.random.randint(kt, (N,), 0, C, dtype=jnp.int32)
    loss = jax.block_until_ready(label_smoothing_cross_entropy(x, target, 0.1))
    ref = _reference(x, target, 0.1)
    assert jnp.allclose(loss, ref, atol=1e-5, rtol=1e-5), (loss, ref)

    # Case 2: ragged N (partial last block, in-kernel row masking, no jnp.pad).
    N2 = 13
    x2 = jax.random.normal(kx, (N2, C), dtype=jnp.float32)
    t2 = jax.random.randint(kt, (N2,), 0, C, dtype=jnp.int32)
    loss2 = jax.block_until_ready(label_smoothing_cross_entropy(x2, t2, 0.1))
    ref2 = _reference(x2, t2, 0.1)
    assert jnp.allclose(loss2, ref2, atol=1e-5, rtol=1e-5), (loss2, ref2)

    # Case 3: bf16 logits fed directly (kernel upcasts internally, halves HBM traffic).
    xb = x.astype(jnp.bfloat16)
    loss3 = jax.block_until_ready(label_smoothing_cross_entropy(xb, target, 0.1))
    ref3 = _reference(xb.astype(jnp.float32), target, 0.1)
    assert jnp.allclose(loss3, ref3, atol=1e-5, rtol=1e-5), (loss3, ref3)

    print("KERNEL_OK")
</pallas_src>

<mosaic_0001>
module attributes {stable_mosaic.version = 11 : i64} {
  func.func @_ls_ce_kernel(%arg0: i32, %arg1: memref<16x32xf32, #tpu.memory_space<vmem>>, %arg2: memref<16x1xi32, #tpu.memory_space<vmem>>, %arg3: memref<1x1x1xf32, #tpu.memory_space<vmem>>) attributes {dimension_semantics = [#tpu.dimension_semantics<parallel>], iteration_bounds = array<i64: 1>, scalar_prefetch = 0 : i64, scratch_operands = 0 : i64, tpu.core_type = #tpu.core_type<tc>, window_params = [{transform_indices = @transform_0, window_bounds = array<i64: 16, 32>}, {transform_indices = @transform_1, window_bounds = array<i64: 16, 1>}, {transform_indices = @transform_2, window_bounds = array<i64: 1, 1, 1>}]} {
    %c0 = arith.constant 0 : index
    %c0_0 = arith.constant 0 : index
    %0 = vector.load %arg1[%c0, %c0_0] : memref<16x32xf32, #tpu.memory_space<vmem>>, vector<16x32xf32>
    %cst = arith.constant dense<0xFF800000> : vector<16xf32>
    %1 = vector.multi_reduction <maximumf>, %0, %cst [1] : vector<16x32xf32> to vector<16xf32>
    %2 = vector.shape_cast %1 : vector<16xf32> to vector<16x1xf32>
    %3 = vector.broadcast %2 : vector<16x1xf32> to vector<16x32xf32>
    %4 = arith.subf %0, %3 : vector<16x32xf32>
    %5 = math.exp %4 : vector<16x32xf32>
    %cst_1 = arith.constant dense<0.000000e+00> : vector<16xf32>
    %6 = vector.multi_reduction <add>, %5, %cst_1 [1] : vector<16x32xf32> to vector<16xf32>
    %7 = vector.shape_cast %6 : vector<16xf32> to vector<16x1xf32>
    %8 = math.log %7 : vector<16x1xf32>
    %9 = arith.addf %8, %2 : vector<16x1xf32>
    %c0_2 = arith.constant 0 : index
    %c0_3 = arith.constant 0 : index
    %10 = vector.load %arg2[%c0_2, %c0_3] : memref<16x1xi32, #tpu.memory_space<vmem>>, vector<16x1xi32>
    %11 = tpu.iota {dimensions = array<i32: 1>} : vector<1x32xi32>
    %12 = vector.broadcast %11 : vector<1x32xi32> to vector<16x32xi32>
    %13 = vector.broadcast %10 : vector<16x1xi32> to vector<16x32xi32>
    %14 = arith.cmpi eq, %12, %13 : vector<16x32xi32>
    %cst_4 = arith.constant 0.000000e+00 : f32
    %15 = vector.broadcast %cst_4 : f32 to vector<16x32xf32>
    %16 = arith.select %14, %0, %15 : vector<16x32xi1>, vector<16x32xf32>
    %cst_5 = arith.constant dense<0.000000e+00> : vector<16xf32>
    %17 = vector.multi_reduction <add>, %16, %cst_5 [1] : vector<16x32xf32> to vector<16xf32>
    %18 = vector.shape_cast %17 : vector<16xf32> to vector<16x1xf32>
    %cst_6 = arith.constant dense<0.000000e+00> : vector<16xf32>
    %19 = vector.multi_reduction <add>, %0, %cst_6 [1] : vector<16x32xf32> to vector<16xf32>
    %20 = vector.shape_cast %19 : vector<16xf32> to vector<16x1xf32>
    %cst_7 = arith.constant 0.899999976 : f32
    %21 = vector.broadcast %cst_7 : f32 to vector<16x1xf32>
    %22 = arith.mulf %21, %18 : vector<16x1xf32>
    %23 = arith.subf %9, %22 : vector<16x1xf32>
    %cst_8 = arith.constant 3.125000e-03 : f32
    %24 = vector.broadcast %cst_8 : f32 to vector<16x1xf32>
    %25 = arith.mulf %24, %20 : vector<16x1xf32>
    %26 = arith.subf %23, %25 : vector<16x1xf32>
    %27 = tpu.iota {dimensions = array<i32: 0>} : vector<16x1xi32>
    %c16_i32 = arith.constant 16 : i32
    %28 = arith.muli %arg0, %c16_i32 : i32
    %29 = vector.broadcast %28 : i32 to vector<16x1xi32>
    %30 = arith.addi %27, %29 : vector<16x1xi32>
    %c16_i32_9 = arith.constant 16 : i32
    %31 = vector.broadcast %c16_i32_9 : i32 to vector<16x1xi32>
    %32 = arith.cmpi slt, %30, %31 : vector<16x1xi32>
    %cst_10 = arith.constant 0.000000e+00 : f32
    %33 = vector.broadcast %cst_10 : f32 to vector<16x1xf32>
    %34 = arith.select %32, %26, %33 : vector<16x1xi1>, vector<16x1xf32>
    %35 = vector.shape_cast %34 : vector<16x1xf32> to vector<1x16x1xf32>
    %cst_11 = arith.constant dense<0.000000e+00> : vector<1xf32>
    %36 = vector.multi_reduction <add>, %35, %cst_11 [1, 2] : vector<1x16x1xf32> to vector<1xf32>
    %37 = vector.shape_cast %36 : vector<1xf32> to vector<1x1x1xf32>
    %38 = vector.extract %37[0, 0, 0] : f32 from vector<1x1x1xf32>
    %39 = vector.broadcast %38 : f32 to vector<1x1x1xf32>
    %c0_12 = arith.constant 0 : index
    %c0_13 = arith.constant 0 : index
    %c0_14 = arith.constant 0 : index
    %40 = vector.load %arg3[%c0_12, %c0_13, %c0_14] : memref<1x1x1xf32, #tpu.memory_space<vmem>>, vector<1x1x1xf32>
    tpu.vector_store %arg3[%c0_12, %c0_13, %c0_14], %39 {strides = array<i32>} : memref<1x1x1xf32, #tpu.memory_space<vmem>>, vector<1x1x1xf32>,
    return
  }
  func.func @transform_0(%arg0: i32) -> (i32, i32) {
    %c0_i32 = arith.constant 0 : i32
    %c0_i32_0 = arith.constant 0 : i32
    return %arg0, %c0_i32 : i32, i32
  }
  func.func @transform_1(%arg0: i32) -> (i32, i32) {
    %c0_i32 = arith.constant 0 : i32
    %c0_i32_0 = arith.constant 0 : i32
    return %arg0, %c0_i32 : i32, i32
  }
  func.func @transform_2(%arg0: i32) -> (i32, i32, i32) {
    %c0_i32 = arith.constant 0 : i32
    %c0_i32_0 = arith.constant 0 : i32
    %c0_i32_1 = arith.constant 0 : i32
    return %arg0, %c0_i32, %c0_i32_0 : i32, i32, i32
  }
}

</mosaic_0001>

<llo_original>
// kernel: tpu_custom_call.1
$region0: #{tpu_custom_call.1}
  #allocation0 [shape = 'u32[]', space=smem, size = 0x4, offset = 0x4, fixed_abs, tag = 'smem constant byte address 0x4 - core index']
  #allocation1 [shape = 'u32[144,128]{1,0:T(1,128)}', space=vmem, size = 0x12000, scoped, tag = 'internal scratch']
  %s0 = inlined_call_operand.hbm [shape: f32[16,32], index: 0, kind: input, shape index: {}]
  %s1 = inlined_call_operand.hbm [shape: s32[16,1], index: 1, kind: input, shape index: {}]
  %s2 = inlined_call_operand.hbm [shape: f32[1,1,1], index: 2, kind: output, shape index: {}]
  %s3 = sld [smem:[#allocation0]]
  $region26: #{tpu_custom_call.1} parent=0
    _
  %s5 = ssub.s32 1, %s3
  %s6 = scalar_select 0, %s5, %s3
  $region1: #{tpu_custom_call.1} parent=0
    #allocation2 [shape = 'u8[8192]{0}', space=vmem, size = 0x2000, scoped, tag = 'input window, operand 0, single buffered']
    #allocation3 [shape = 's32[1]{0}', space=sflag, size = 0x4, scoped, tag = 'scoped memory for tpu_custom_call.1']
    #allocation4 [shape = 's32[1]{0}', space=sflag, size = 0x4, scoped, tag = 'scoped memory for tpu_custom_call.1']
    #allocation5 [shape = 'u8[8192]{0}', space=vmem, size = 0x2000, scoped, tag = 'input window, operand 1, single buffered']
    #allocation6 [shape = 's32[1]{0}', space=sflag, size = 0x4, scoped, tag = 'scoped memory for tpu_custom_call.1']
    #allocation7 [shape = 'u8[512]{0}', space=vmem, size = 0x400, scoped, tag = 'output window, operand 0, single buffered']
    %7 = vsyncpa [#allocation3], 0
    %8 = vsyncpa [#allocation6], 0
    %9 = vsyncpa [#allocation4], 0
    // Predicated region
    $region2: #{tpu_custom_call.1} parent=1 // pred_check
      _
    $region3: #{tpu_custom_call.1} parent=1 // pred_check_branch
      %11 = sbr.rel (0) target = $region5
    $region4: #{tpu_custom_call.1} parent=1 // pred_region
      %s13 = ssub.s32 256, 256
      %14 = vsyncadd [#allocation3], %s13
      %s15 = sshll.u32 [#allocation2], 4
      %s16 = int_to_ptr.vmem [resolvable:$true] %s15
      %21 = dma.hbm_to_vmem [thread:$0]  %s0, 256, %s16, [#allocation3], 128, 128, 8
    $region5: #{tpu_custom_call.1} parent=1 // pred_fallthru
      _
    // Predicated region
    $region6: #{tpu_custom_call.1} parent=1 // pred_check
      _
    $region7: #{tpu_custom_call.1} parent=1 // pred_check_branch
      %23 = sbr.rel (0) target = $region9
    $region8: #{tpu_custom_call.1} parent=1 // pred_region
      %s25 = ssub.s32 256, 256
      %26 = vsyncadd [#allocation6], %s25
      %s27 = sshll.u32 [#allocation5], 4
      %s28 = int_to_ptr.vmem [resolvable:$true] %s27
      %33 = dma.hbm_to_vmem [thread:$0]  %s1, 256, %s28, [#allocation6], 128, 128, 8
    $region9: #{tpu_custom_call.1} parent=1 // pred_fallthru
      _
    // Predicated region
    $region10: #{tpu_custom_call.1} parent=1 // pred_check
      _
    $region11: #{tpu_custom_call.1} parent=1 // pred_check_branch
      %35 = sbr.rel (0) target = $region13
    $region12: #{tpu_custom_call.1} parent=1 // pred_region
      %36 = dma.done [#allocation3], 256
    $region13: #{tpu_custom_call.1} parent=1 // pred_fallthru
      _
    // Predicated region
    $region14: #{tpu_custom_call.1} parent=1 // pred_check
      _
    $region15: #{tpu_custom_call.1} parent=1 // pred_check_branch
      %38 = sbr.rel (0) target = $region17
    $region16: #{tpu_custom_call.1} parent=1 // pred_region
      %39 = dma.done [#allocation6], 256
    $region17: #{tpu_custom_call.1} parent=1 // pred_fallthru
      _
    %v40 = vld [vmem:[#allocation2] sm:$0xff]
    %v41 = vld [vmem:[#allocation2 + $0x8] sm:$0xff]
    %vm42 = vcmask 261120
    %v43 = vsel %vm42, %v40, -inf
    %44 = vmax.xlane.f32.xlu0 %v43
    %v45 = vpop.xlane.xlu0 %44
    %v46 = vsel %vm42, %v41, -inf
    %47 = vmax.xlane.f32.xlu0 %v46
    %v48 = vpop.xlane.xlu0 %47
    %v49 = vsub.f32 %v40, %v45
    %v50 = vsub.f32 %v41, %v48
    %v51 = vmul.f32 %v49, 1.442695
    %v52 = vpow.pop %v51
    %v53 = vmul.f32 %v50, 1.442695
    %v54 = vpow.pop %v53
    %v55 = vsel %vm42, %v52, 0.0
    %56 = vadd.xlane.f32.xlu0 %v55
    %v57 = vpop.xlane.xlu0 %56
    %v58 = vsel %vm42, %v54, 0.0
    %59 = vadd.xlane.f32.xlu0 %v58
    %v60 = vpop.xlane.xlu0 %59
    %v61 = vlog2.pop %v57
    %v62 = vmul.f32 %v61, 0.6931472
    %v63 = vlog2.pop %v60
    %v64 = vmul.f32 %v63, 0.6931472
    %v65 = vadd.f32 %v62, %v45
    %v66 = vadd.f32 %v64, %v48
    %v67 = vld [vmem:[#allocation5] sm:$0xff]
    %v68 = vld [vmem:[#allocation5 + $0x8] sm:$0xff]
    %v69 = vlaneseq
    %v70 = vand.u32 %v69, 127
    %71 = vset.pattern.permute.xlu0 0
    %72 = vperm.xlu0 %71, %v67
    %v73 = vpop.permute.xlu0 %72
    %74 = vset.pattern.permute.xlu0 0
    %75 = vperm.xlu0 %74, %v68
    %v76 = vpop.permute.xlu0 %75
    %vm77 = vcmp.eq.s32.totalorder %v70, %v73
    %vm78 = vcmp.eq.s32.totalorder %v70, %v76
    %v79 = vsel %vm77, %v40, 0.0
    %v80 = vsel %vm78, %v41, 0.0
    %v81 = vsel %vm42, %v79, 0.0
    %82 = vadd.xlane.f32.xlu0 %v81
    %v83 = vpop.xlane.xlu0 %82
    %v84 = vsel %vm42, %v80, 0.0
    %85 = vadd.xlane.f32.xlu0 %v84
    %v86 = vpop.xlane.xlu0 %85
    %v87 = vsel %vm42, %v40, 0.0
    %88 = vadd.xlane.f32.xlu0 %v87
    %v89 = vpop.xlane.xlu0 %88
    %v90 = vsel %vm42, %v41, 0.0
    %91 = vadd.xlane.f32.xlu0 %v90
    %v92 = vpop.xlane.xlu0 %91
    %v93 = vmul.f32 %v83, 0.9
    %v94 = vmul.f32 %v86, 0.9
    %v95 = vsub.f32 %v65, %v93
    %v96 = vsub.f32 %v66, %v94
    %v97 = vmul.f32 %v89, 0.003125
    %v98 = vmul.f32 %v92, 0.003125
    %v99 = vsub.f32 %v95, %v97
    %v100 = vsub.f32 %v96, %v98
    %v101 = vlaneseq
    %v102 = vshrl.u32 %v101, 7
    %v103 = vadd.s32 %v102, 8
    %s104 = smul.u32 0, 16
    %v105 = vstv %s104
    %v106 = vadd.s32 %v102, %v105
    %v107 = vadd.s32 %v103, %v105
    %vm108 = vcmp.lt.s32.totalorder %v106, 16
    %vm109 = vcmp.lt.s32.totalorder %v107, 16
    %v110 = vsel %vm108, %v99, 0.0
    %v111 = vsel %vm109, %v100, 0.0
    %vm112 = vcmask 7168
    %v113 = vsel %vm112, %v110, 0.0
    %v114 = vsel %vm112, %v111, 0.0
    %v115 = vadd.f32 %v113, %v114
    %116 = vadd.xlane.f32.xlu0 %v115
    %v117 = vpop.xlane.xlu0 %116
    %v118 = vrot.slane %v117, 4
    %v119 = vadd.f32 %v117, %v118
    %v120 = vrot.slane %v119, 2
    %v121 = vadd.f32 %v119, %v120
    %v122 = vrot.slane %v121, 1
    %v123 = vadd.f32 %v121, %v122
    %s124 = vtos %v123
    %v125 = vstv %s124
    %vm126 = vcmask 0
    %127 = vst.msk [vmem:[#allocation7] sm:$0x1] %vm126, %v125
    // Predicated region
    $region18: #{tpu_custom_call.1} parent=1 // pred_check
      _
    $region19: #{tpu_custom_call.1} parent=1 // pred_check_branch
      %129 = sbr.rel (0) target = $region21
    $region20: #{tpu_custom_call.1} parent=1 // pred_region
      %s131 = ssub.s32 16, 16
      %132 = vsyncadd [#allocation4], %s131
      %s134 = sshll.u32 [#allocation7], 4
      %s135 = int_to_ptr.vmem [resolvable:$true] %s134
      %137 = dma.vmem_to_hbm [thread:$0]  %s135, 16, %s2, [#allocation4]
    $region21: #{tpu_custom_call.1} parent=1 // pred_fallthru
      _
    // Predicated region
    $region22: #{tpu_custom_call.1} parent=1 // pred_check
      _
    $region23: #{tpu_custom_call.1} parent=1 // pred_check_branch
      %139 = sbr.rel (0) target = $region25
    $region24: #{tpu_custom_call.1} parent=1 // pred_region
      %140 = dma.done [#allocation4], 16
    $region25: #{tpu_custom_call.1} parent=1 // pred_fallthru
      _
    %141 = vsyncpa [#allocation3], 1
    %142 = vsyncpa [#allocation6], 1
    %143 = vsyncpa [#allocation4], 1

</llo_original>
